<compile_context>
chip_gen: v7x
topology: tpu7x:2x2x1
jax: 0.10.0
libtpu: 0.0.40
codegen_flags: <defaults>
</compile_context>

<pallas_src>
import jax
import jax.numpy as jnp
from jax.experimental import pallas as pl
from jax.experimental.pallas import tpu as pltpu

LEAKY_SLOPE = 0.01   # torch nn.LeakyReLU default negative_slope
PAD = 128            # lane width every feature dim is padded to
N_LAYERS = 6
DIMS = [None, 128, 64, 32, 16, 8, 1]   # [n_input_features, ...layer widths]


def _round_up(n, m):
    return (n + m - 1) // m * m


def _default_compute_dtype():
    """bf16 on v6e/v7x (doubles MXU rate, halves x-stream HBM bytes);
    f32 on v5-class chips (no bf16 VPU/EUP there, model is tiny)."""
    try:
        kind = jax.devices()[0].device_kind.lower()
    except Exception:
        return jnp.bfloat16
    if "v5" in kind:
        return jnp.float32
    return jnp.bfloat16


# ----------------------------------------------------------------------------
# Kernel
# ----------------------------------------------------------------------------
def salary_predict_kernel(x_ref, w_ref, b_ref, o_ref):
    """x_ref: (bt, 128) compute-dtype tile of the batch.
       w_ref: (6, 128, 128) compute-dtype stacked (lane-padded) weights.
       b_ref: (8, 128) f32 stacked (lane-padded) biases (rows 0..5 used).
       o_ref: (bt, 1) f32 output tile."""
    h = x_ref[...]
    cd = h.dtype  # compute dtype (bf16 or f32)

    # Layer 1: Linear(F, 128) + ReLU
    h = jnp.dot(h, w_ref[0], preferred_element_type=jnp.float32) + b_ref[0:1, :]
    h = jnp.maximum(h, 0.0).astype(cd)

    # Layer 2: Linear(128, 64) + ReLU
    h = jnp.dot(h, w_ref[1], preferred_element_type=jnp.float32) + b_ref[1:2, :]
    h = jnp.maximum(h, 0.0).astype(cd)

    # Layers 3-5: Linear + LeakyReLU(0.01)   (statically unrolled)
    for l in range(2, 5):
        h = jnp.dot(h, w_ref[l], preferred_element_type=jnp.float32) + b_ref[l:l + 1, :]
        h = jnp.where(h >= 0.0, h, LEAKY_SLOPE * h).astype(cd)

    # Layer 6: Linear(8, 1)  (padded to 128 cols; only column 0 is real)
    h = jnp.dot(h, w_ref[5], preferred_element_type=jnp.float32) + b_ref[5:6, :]

    o_ref[...] = h[:, :1].astype(o_ref.dtype)


# ----------------------------------------------------------------------------
# Parameter packing (pad every dim to 128 lanes, stack layers)
# ----------------------------------------------------------------------------
def pack_params(params, compute_dtype):
    ws, bs = [], []
    for (w, b) in params:
        fi, fo = w.shape
        wp = jnp.zeros((PAD, PAD), compute_dtype).at[:fi, :fo].set(
            w.astype(compute_dtype))
        bp = jnp.zeros((PAD,), jnp.float32).at[:fo].set(
            b.reshape(-1).astype(jnp.float32))
        ws.append(wp)
        bs.append(bp)
    w_stack = jnp.stack(ws)                                       # (6, 128, 128)
    b_stack = jnp.zeros((8, PAD), jnp.float32).at[:N_LAYERS].set(jnp.stack(bs))
    return w_stack, b_stack


# ----------------------------------------------------------------------------
# Wrapper
# ----------------------------------------------------------------------------
def salary_predict(x, params, *, batch_tile=1024, compute_dtype=None):
    """x: (B, F) float32.  params: list of 6 (W, b) pairs, W:(in,out), b:(1,out)."""
    if compute_dtype is None:
        compute_dtype = _default_compute_dtype()

    B, F = x.shape
    assert F <= PAD, f"n_input_features must be <= {PAD}"

    # Fixed tile (sweep 512/1024/2048 at large B); shrink to the batch when the
    # batch itself is small.  Tile stays a multiple of 8 sublanes.
    bt = min(batch_tile, _round_up(B, 8))
    bt = _round_up(bt, 8)
    B_pad = _round_up(B, bt)
    grid = (B_pad // bt,)

    # Pad x to (B_pad, 128) and cast to the compute dtype (lane-dense x-stream).
    x_p = jnp.zeros((B_pad, PAD), compute_dtype).at[:B, :F].set(
        x.astype(compute_dtype))

    w_stack, b_stack = pack_params(params, compute_dtype)

    flops = 2 * B_pad * PAD * PAD * N_LAYERS
    bytes_accessed = (x_p.size * x_p.dtype.itemsize
                      + w_stack.size * w_stack.dtype.itemsize
                      + b_stack.size * 4
                      + B_pad * 4)

    out = pl.pallas_call(
        salary_predict_kernel,
        out_shape=jax.ShapeDtypeStruct((B_pad, 1), jnp.float32),
        grid_spec=pltpu.PrefetchScalarGridSpec(
            num_scalar_prefetch=0,
            grid=grid,
            in_specs=[
                pl.BlockSpec((bt, PAD), lambda i: (i, 0)),                # x tile
                pl.BlockSpec((N_LAYERS, PAD, PAD), lambda i: (0, 0, 0)),  # weights (resident)
                pl.BlockSpec((8, PAD), lambda i: (0, 0)),                 # biases  (resident)
            ],
            out_specs=pl.BlockSpec((bt, 1), lambda i: (i, 0)),
        ),
        compiler_params=pltpu.CompilerParams(
            dimension_semantics=("parallel",),     # megacore sharding on v7x
            vmem_limit_bytes=48 << 20,             # headroom for 2048-row tiles
        ),
        cost_estimate=pl.CostEstimate(
            flops=flops, transcendentals=0, bytes_accessed=bytes_accessed),
    )(x_p, w_stack, b_stack)

    return out[:B]


# ----------------------------------------------------------------------------
# Reference / init
# ----------------------------------------------------------------------------
def init_params(key, n_input_features):
    """torch nn.Linear-style init: uniform(-1/sqrt(fan_in), +1/sqrt(fan_in))."""
    dims = [n_input_features] + DIMS[1:]
    params = []
    for i in range(len(dims) - 1):
        fan_in, fan_out = dims[i], dims[i + 1]
        key, kw, kb = jax.random.split(key, 3)
        bound = 1.0 / jnp.sqrt(float(fan_in))
        w = jax.random.uniform(kw, (fan_in, fan_out), jnp.float32, -bound, bound)
        b = jax.random.uniform(kb, (1, fan_out), jnp.float32, -bound, bound)
        params.append((w, b))
    return params


def reference_forward(x, params, compute_dtype):
    """Pure-JAX reference mirroring the kernel's dtype pattern exactly."""
    acts = ["relu", "relu", "leaky", "leaky", "leaky", None]
    h = x.astype(compute_dtype)
    for (w, b), act in zip(params, acts):
        h = jnp.dot(h, w.astype(compute_dtype),
                    preferred_element_type=jnp.float32)
        h = h + b.astype(jnp.float32)
        if act == "relu":
            h = jnp.maximum(h, 0.0).astype(compute_dtype)
        elif act == "leaky":
            h = jnp.where(h >= 0.0, h, LEAKY_SLOPE * h).astype(compute_dtype)
    return h.astype(jnp.float32)


if __name__ == "__main__":
    key = jax.random.PRNGKey(0)
    n_input_features = 32

    # --- Small demo batch (matches the module's expected usage) -------------
    batch = 8
    key, kx = jax.random.split(key)
    x = jax.random.normal(kx, (batch, n_input_features), jnp.float32)
    params = init_params(key, n_input_features)

    # Default path (bf16 on v6e/v7x, f32 on v5e).
    cd = _default_compute_dtype()
    out = jax.block_until_ready(salary_predict(x, params))
    ref = reference_forward(x, params, cd)
    assert out.shape == (batch, 1), out.shape
    assert jnp.allclose(out, ref, atol=2e-2, rtol=2e-2), (out, ref)

    # Forced-f32 path: must match the f32 reference tightly.
    out_f32 = jax.block_until_ready(
        salary_predict(x, params, compute_dtype=jnp.float32))
    ref_f32 = reference_forward(x, params, jnp.float32)
    assert jnp.allclose(out_f32, ref_f32, atol=1e-4, rtol=1e-4), (out_f32, ref_f32)

    # Ragged batch + multi-step grid check (exercises padding & pipelining).
    key, kx2 = jax.random.split(key)
    x2 = jax.random.normal(kx2, (50, n_input_features), jnp.float32)
    out2 = jax.block_until_ready(
        salary_predict(x2, params, batch_tile=16, compute_dtype=jnp.float32))
    ref2 = reference_forward(x2, params, jnp.float32)
    assert out2.shape == (50, 1), out2.shape
    assert jnp.allclose(out2, ref2, atol=1e-4, rtol=1e-4), (out2, ref2)

    print("KERNEL_OK")
</pallas_src>

<mosaic_0001>
module attributes {stable_mosaic.version = 11 : i64} {
  func.func @salary_predict_kernel(%arg0: i32, %arg1: memref<8x128xbf16, #tpu.memory_space<vmem>>, %arg2: memref<6x128x128xbf16, #tpu.memory_space<vmem>>, %arg3: memref<8x128xf32, #tpu.memory_space<vmem>>, %arg4: memref<8x1xf32, #tpu.memory_space<vmem>>) attributes {dimension_semantics = [#tpu.dimension_semantics<parallel>], iteration_bounds = array<i64: 1>, scalar_prefetch = 0 : i64, scratch_operands = 0 : i64, tpu.core_type = #tpu.core_type<tc>, window_params = [{transform_indices = @transform_0, window_bounds = array<i64: 8, 128>}, {pipeline_mode = #tpu.pipeline_mode<synchronous>, transform_indices = @transform_1, window_bounds = array<i64: 6, 128, 128>}, {pipeline_mode = #tpu.pipeline_mode<synchronous>, transform_indices = @transform_2, window_bounds = array<i64: 8, 128>}, {transform_indices = @transform_3, window_bounds = array<i64: 8, 1>}]} {
    %c0 = arith.constant 0 : index
    %c0_0 = arith.constant 0 : index
    %0 = vector.load %arg1[%c0, %c0_0] : memref<8x128xbf16, #tpu.memory_space<vmem>>, vector<8x128xbf16>
    %c0_1 = arith.constant 0 : index
    %c0_2 = arith.constant 0 : index
    %c0_3 = arith.constant 0 : index
    %1 = vector.load %arg2[%c0_1, %c0_2, %c0_3] : memref<6x128x128xbf16, #tpu.memory_space<vmem>>, vector<1x128x128xbf16>
    %2 = vector.shape_cast %1 : vector<1x128x128xbf16> to vector<128x128xbf16>
    %cst = arith.constant dense<0.000000e+00> : vector<8x128xf32>
    %3 = tpu.matmul %0, %2, %cst {dimension_numbers = #tpu.dot_dimension_numbers<[1], [0], [0], [1], [0, 0, 1, 1], [], []>} : vector<8x128xbf16>, vector<128x128xbf16>, vector<8x128xf32> -> vector<8x128xf32>
    %c0_4 = arith.constant 0 : index
    %c0_5 = arith.constant 0 : index
    %4 = vector.load %arg3[%c0_4, %c0_5] : memref<8x128xf32, #tpu.memory_space<vmem>>, vector<1x128xf32>
    %5 = vector.broadcast %4 : vector<1x128xf32> to vector<8x128xf32>
    %6 = arith.addf %3, %5 : vector<8x128xf32>
    %cst_6 = arith.constant 0.000000e+00 : f32
    %7 = vector.broadcast %cst_6 : f32 to vector<8x128xf32>
    %8 = arith.maximumf %6, %7 : vector<8x128xf32>
    %9 = arith.truncf %8 : vector<8x128xf32> to vector<8x128xbf16>
    %c1 = arith.constant 1 : index
    %c0_7 = arith.constant 0 : index
    %c0_8 = arith.constant 0 : index
    %10 = vector.load %arg2[%c1, %c0_7, %c0_8] : memref<6x128x128xbf16, #tpu.memory_space<vmem>>, vector<1x128x128xbf16>
    %11 = vector.shape_cast %10 : vector<1x128x128xbf16> to vector<128x128xbf16>
    %cst_9 = arith.constant dense<0.000000e+00> : vector<8x128xf32>
    %12 = tpu.matmul %9, %11, %cst_9 {dimension_numbers = #tpu.dot_dimension_numbers<[1], [0], [0], [1], [0, 0, 1, 1], [], []>} : vector<8x128xbf16>, vector<128x128xbf16>, vector<8x128xf32> -> vector<8x128xf32>
    %c1_10 = arith.constant 1 : index
    %c0_11 = arith.constant 0 : index
    %13 = vector.load %arg3[%c1_10, %c0_11] : memref<8x128xf32, #tpu.memory_space<vmem>>, vector<1x128xf32>
    %14 = vector.broadcast %13 : vector<1x128xf32> to vector<8x128xf32>
    %15 = arith.addf %12, %14 : vector<8x128xf32>
    %cst_12 = arith.constant 0.000000e+00 : f32
    %16 = vector.broadcast %cst_12 : f32 to vector<8x128xf32>
    %17 = arith.maximumf %15, %16 : vector<8x128xf32>
    %18 = arith.truncf %17 : vector<8x128xf32> to vector<8x128xbf16>
    %c2 = arith.constant 2 : index
    %c0_13 = arith.constant 0 : index
    %c0_14 = arith.constant 0 : index
    %19 = vector.load %arg2[%c2, %c0_13, %c0_14] : memref<6x128x128xbf16, #tpu.memory_space<vmem>>, vector<1x128x128xbf16>
    %20 = vector.shape_cast %19 : vector<1x128x128xbf16> to vector<128x128xbf16>
    %cst_15 = arith.constant dense<0.000000e+00> : vector<8x128xf32>
    %21 = tpu.matmul %18, %20, %cst_15 {dimension_numbers = #tpu.dot_dimension_numbers<[1], [0], [0], [1], [0, 0, 1, 1], [], []>} : vector<8x128xbf16>, vector<128x128xbf16>, vector<8x128xf32> -> vector<8x128xf32>
    %c2_16 = arith.constant 2 : index
    %c0_17 = arith.constant 0 : index
    %22 = vector.load %arg3[%c2_16, %c0_17] : memref<8x128xf32, #tpu.memory_space<vmem>>, vector<1x128xf32>
    %23 = vector.broadcast %22 : vector<1x128xf32> to vector<8x128xf32>
    %24 = arith.addf %21, %23 : vector<8x128xf32>
    %cst_18 = arith.constant 0.000000e+00 : f32
    %25 = vector.broadcast %cst_18 : f32 to vector<8x128xf32>
    %26 = arith.cmpf oge, %24, %25 : vector<8x128xf32>
    %cst_19 = arith.constant 0.00999999977 : f32
    %27 = vector.broadcast %cst_19 : f32 to vector<8x128xf32>
    %28 = arith.mulf %27, %24 : vector<8x128xf32>
    %29 = arith.select %26, %24, %28 : vector<8x128xi1>, vector<8x128xf32>
    %30 = arith.truncf %29 : vector<8x128xf32> to vector<8x128xbf16>
    %c3 = arith.constant 3 : index
    %c0_20 = arith.constant 0 : index
    %c0_21 = arith.constant 0 : index
    %31 = vector.load %arg2[%c3, %c0_20, %c0_21] : memref<6x128x128xbf16, #tpu.memory_space<vmem>>, vector<1x128x128xbf16>
    %32 = vector.shape_cast %31 : vector<1x128x128xbf16> to vector<128x128xbf16>
    %cst_22 = arith.constant dense<0.000000e+00> : vector<8x128xf32>
    %33 = tpu.matmul %30, %32, %cst_22 {dimension_numbers = #tpu.dot_dimension_numbers<[1], [0], [0], [1], [0, 0, 1, 1], [], []>} : vector<8x128xbf16>, vector<128x128xbf16>, vector<8x128xf32> -> vector<8x128xf32>
    %c3_23 = arith.constant 3 : index
    %c0_24 = arith.constant 0 : index
    %34 = vector.load %arg3[%c3_23, %c0_24] : memref<8x128xf32, #tpu.memory_space<vmem>>, vector<1x128xf32>
    %35 = vector.broadcast %34 : vector<1x128xf32> to vector<8x128xf32>
    %36 = arith.addf %33, %35 : vector<8x128xf32>
    %cst_25 = arith.constant 0.000000e+00 : f32
    %37 = vector.broadcast %cst_25 : f32 to vector<8x128xf32>
    %38 = arith.cmpf oge, %36, %37 : vector<8x128xf32>
    %cst_26 = arith.constant 0.00999999977 : f32
    %39 = vector.broadcast %cst_26 : f32 to vector<8x128xf32>
    %40 = arith.mulf %39, %36 : vector<8x128xf32>
    %41 = arith.select %38, %36, %40 : vector<8x128xi1>, vector<8x128xf32>
    %42 = arith.truncf %41 : vector<8x128xf32> to vector<8x128xbf16>
    %c4 = arith.constant 4 : index
    %c0_27 = arith.constant 0 : index
    %c0_28 = arith.constant 0 : index
    %43 = vector.load %arg2[%c4, %c0_27, %c0_28] : memref<6x128x128xbf16, #tpu.memory_space<vmem>>, vector<1x128x128xbf16>
    %44 = vector.shape_cast %43 : vector<1x128x128xbf16> to vector<128x128xbf16>
    %cst_29 = arith.constant dense<0.000000e+00> : vector<8x128xf32>
    %45 = tpu.matmul %42, %44, %cst_29 {dimension_numbers = #tpu.dot_dimension_numbers<[1], [0], [0], [1], [0, 0, 1, 1], [], []>} : vector<8x128xbf16>, vector<128x128xbf16>, vector<8x128xf32> -> vector<8x128xf32>
    %c4_30 = arith.constant 4 : index
    %c0_31 = arith.constant 0 : index
    %46 = vector.load %arg3[%c4_30, %c0_31] : memref<8x128xf32, #tpu.memory_space<vmem>>, vector<1x128xf32>
    %47 = vector.broadcast %46 : vector<1x128xf32> to vector<8x128xf32>
    %48 = arith.addf %45, %47 : vector<8x128xf32>
    %cst_32 = arith.constant 0.000000e+00 : f32
    %49 = vector.broadcast %cst_32 : f32 to vector<8x128xf32>
    %50 = arith.cmpf oge, %48, %49 : vector<8x128xf32>
    %cst_33 = arith.constant 0.00999999977 : f32
    %51 = vector.broadcast %cst_33 : f32 to vector<8x128xf32>
    %52 = arith.mulf %51, %48 : vector<8x128xf32>
    %53 = arith.select %50, %48, %52 : vector<8x128xi1>, vector<8x128xf32>
    %54 = arith.truncf %53 : vector<8x128xf32> to vector<8x128xbf16>
    %c5 = arith.constant 5 : index
    %c0_34 = arith.constant 0 : index
    %c0_35 = arith.constant 0 : index
    %55 = vector.load %arg2[%c5, %c0_34, %c0_35] : memref<6x128x128xbf16, #tpu.memory_space<vmem>>, vector<1x128x128xbf16>
    %56 = vector.shape_cast %55 : vector<1x128x128xbf16> to vector<128x128xbf16>
    %cst_36 = arith.constant dense<0.000000e+00> : vector<8x128xf32>
    %57 = tpu.matmul %54, %56, %cst_36 {dimension_numbers = #tpu.dot_dimension_numbers<[1], [0], [0], [1], [0, 0, 1, 1], [], []>} : vector<8x128xbf16>, vector<128x128xbf16>, vector<8x128xf32> -> vector<8x128xf32>
    %c5_37 = arith.constant 5 : index
    %c0_38 = arith.constant 0 : index
    %58 = vector.load %arg3[%c5_37, %c0_38] : memref<8x128xf32, #tpu.memory_space<vmem>>, vector<1x128xf32>
    %59 = vector.broadcast %58 : vector<1x128xf32> to vector<8x128xf32>
    %60 = arith.addf %57, %59 : vector<8x128xf32>
    %61 = vector.extract_strided_slice %60 {offsets = [0, 0], sizes = [8, 1], strides = [1, 1]} : vector<8x128xf32> to vector<8x1xf32>
    %c0_39 = arith.constant 0 : index
    %c0_40 = arith.constant 0 : index
    %62 = vector.load %arg4[%c0_39, %c0_40] : memref<8x1xf32, #tpu.memory_space<vmem>>, vector<8x1xf32>
    tpu.vector_store %arg4[%c0_39, %c0_40], %61 {strides = array<i32>} : memref<8x1xf32, #tpu.memory_space<vmem>>, vector<8x1xf32>,
    return
  }
  func.func @transform_0(%arg0: i32) -> (i32, i32) {
    %c0_i32 = arith.constant 0 : i32
    %c0_i32_0 = arith.constant 0 : i32
    return %arg0, %c0_i32 : i32, i32
  }
  func.func @transform_1(%arg0: i32) -> (i32, i32, i32) {
    %c0_i32 = arith.constant 0 : i32
    %c0_i32_0 = arith.constant 0 : i32
    %c0_i32_1 = arith.constant 0 : i32
    %c0_i32_2 = arith.constant 0 : i32
    return %c0_i32, %c0_i32_0, %c0_i32_1 : i32, i32, i32
  }
  func.func @transform_2(%arg0: i32) -> (i32, i32) {
    %c0_i32 = arith.constant 0 : i32
    %c0_i32_0 = arith.constant 0 : i32
    %c0_i32_1 = arith.constant 0 : i32
    return %c0_i32, %c0_i32_0 : i32, i32
  }
  func.func @transform_3(%arg0: i32) -> (i32, i32) {
    %c0_i32 = arith.constant 0 : i32
    %c0_i32_0 = arith.constant 0 : i32
    return %arg0, %c0_i32 : i32, i32
  }
}

</mosaic_0001>

<llo_original>
// kernel: tpu_custom_call.1
$region0: #{tpu_custom_call.1}
  #allocation0 [shape = 'u32[]', space=smem, size = 0x4, offset = 0x4, fixed_abs, tag = 'smem constant byte address 0x4 - core index']
  #allocation1 [shape = 'u32[144,128]{1,0:T(1,128)}', space=vmem, size = 0x12000, scoped, tag = 'internal scratch']
  %s0 = inlined_call_operand.hbm [shape: bf16[8,128], index: 0, kind: input, shape index: {}]
  %s1 = inlined_call_operand.hbm [shape: bf16[6,128,128], index: 1, kind: input, shape index: {}]
  %s2 = inlined_call_operand.hbm [shape: f32[8,128], index: 2, kind: input, shape index: {}]
  %s3 = inlined_call_operand.vmem [shape: f32[8,1], index: 3, kind: output, shape index: {}]
  %s4 = sld [smem:[#allocation0]]
  $region34: #{tpu_custom_call.1} parent=0
    _
  %s6 = ssub.s32 1, %s4
  %s7 = scalar_select 0, %s6, %s4
  $region1: #{tpu_custom_call.1} parent=0
    #allocation2 [shape = 'u8[2048]{0}', space=vmem, size = 0x800, scoped, tag = 'input window, operand 0, single buffered']
    #allocation3 [shape = 's32[1]{0}', space=sflag, size = 0x4, scoped, tag = 'scoped memory for tpu_custom_call.1']
    #allocation4 [shape = 'u8[196608]{0}', space=vmem, size = 0x30000, scoped, tag = 'input window, operand 1, single buffered']
    #allocation5 [shape = 's32[1]{0}', space=sflag, size = 0x4, scoped, tag = 'scoped memory for tpu_custom_call.1']
    #allocation6 [shape = 'u8[4096]{0}', space=vmem, size = 0x1000, scoped, tag = 'input window, operand 2, single buffered']
    %8 = vsyncpa [#allocation3], 0
    %9 = vsyncpa [#allocation5], 0
    // Predicated region
    $region2: #{tpu_custom_call.1} parent=1 // pred_check
      _
    $region3: #{tpu_custom_call.1} parent=1 // pred_check_branch
      %11 = sbr.rel (0) target = $region5
    $region4: #{tpu_custom_call.1} parent=1 // pred_region
      %s13 = ssub.s32 64, 64
      %14 = vsyncadd [#allocation3], %s13
      %s16 = sshll.u32 [#allocation2], 4
      %s17 = int_to_ptr.vmem [resolvable:$true] %s16
      %19 = dma.hbm_to_vmem [thread:$0]  %s0, 64, %s17, [#allocation3]
    $region5: #{tpu_custom_call.1} parent=1 // pred_fallthru
      _
    // Predicated region
    $region6: #{tpu_custom_call.1} parent=1 // pred_check
      _
    $region7: #{tpu_custom_call.1} parent=1 // pred_check_branch
      %21 = sbr.rel (0) target = $region9
    $region8: #{tpu_custom_call.1} parent=1 // pred_region
      %s23 = ssub.s32 6144, 6144
      %24 = vsyncadd [#allocation5], %s23
      %s25 = sshll.u32 [#allocation4], 4
      %s26 = int_to_ptr.vmem [resolvable:$true] %s25
      %31 = dma.hbm_to_vmem [thread:$0]  %s1, 6144, %s26, [#allocation5], 64, 64, 4
    $region9: #{tpu_custom_call.1} parent=1 // pred_fallthru
      _
    // Predicated region
    $region10: #{tpu_custom_call.1} parent=1 // pred_check
      _
    $region11: #{tpu_custom_call.1} parent=1 // pred_check_branch
      %33 = sbr.rel (0) target = $region13
    $region12: #{tpu_custom_call.1} parent=1 // pred_region
      %s35 = ssub.s32 128, 128
      %36 = vsyncadd [#allocation5], %s35
      %s38 = sshll.u32 [#allocation6], 4
      %s39 = int_to_ptr.vmem [resolvable:$true] %s38
      %41 = dma.hbm_to_vmem [thread:$0]  %s2, 128, %s39, [#allocation5]
    $region13: #{tpu_custom_call.1} parent=1 // pred_fallthru
      _
    // Predicated region
    $region14: #{tpu_custom_call.1} parent=1 // pred_check
      _
    $region15: #{tpu_custom_call.1} parent=1 // pred_check_branch
      %43 = sbr.rel (0) target = $region17
    $region16: #{tpu_custom_call.1} parent=1 // pred_region
      %44 = dma.done [#allocation3], 64
    $region17: #{tpu_custom_call.1} parent=1 // pred_fallthru
      _
    // Predicated region
    $region18: #{tpu_custom_call.1} parent=1 // pred_check
      _
    $region19: #{tpu_custom_call.1} parent=1 // pred_check_branch
      %46 = sbr.rel (0) target = $region21
    $region20: #{tpu_custom_call.1} parent=1 // pred_region
      %47 = dma.done [#allocation5], 6144
    $region21: #{tpu_custom_call.1} parent=1 // pred_fallthru
      _
    // Predicated region
    $region22: #{tpu_custom_call.1} parent=1 // pred_check
      _
    $region23: #{tpu_custom_call.1} parent=1 // pred_check_branch
      %49 = sbr.rel (0) target = $region25
    $region24: #{tpu_custom_call.1} parent=1 // pred_region
      %50 = dma.done [#allocation5], 128
    $region25: #{tpu_custom_call.1} parent=1 // pred_fallthru
      _
    %v52 = vld [vmem:[#allocation2] sm:$0xf]
    %v53 = vld [vmem:[#allocation4] sm:$0xf]
    %v54 = vld [vmem:[#allocation4 + $0x4] sm:$0xf]
    %v55 = vld [vmem:[#allocation4 + $0x8] sm:$0xf]
    %v56 = vld [vmem:[#allocation4 + $0xc] sm:$0xf]
    %v57 = vld [vmem:[#allocation4 + $0x10] sm:$0xf]
    %v58 = vld [vmem:[#allocation4 + $0x14] sm:$0xf]
    %v59 = vld [vmem:[#allocation4 + $0x18] sm:$0xf]
    %v60 = vld [vmem:[#allocation4 + $0x1c] sm:$0xf]
    %v61 = vld [vmem:[#allocation4 + $0x20] sm:$0xf]
    %v62 = vld [vmem:[#allocation4 + $0x24] sm:$0xf]
    %v63 = vld [vmem:[#allocation4 + $0x28] sm:$0xf]
    %v64 = vld [vmem:[#allocation4 + $0x2c] sm:$0xf]
    %v65 = vld [vmem:[#allocation4 + $0x30] sm:$0xf]
    %v66 = vld [vmem:[#allocation4 + $0x34] sm:$0xf]
    %v67 = vld [vmem:[#allocation4 + $0x38] sm:$0xf]
    %v68 = vld [vmem:[#allocation4 + $0x3c] sm:$0xf]
    %v69 = vld [vmem:[#allocation6] sm:$0x1]
    %v70 = vlaneseq
    %v71 = vshrl.u32 %v70, 7
    %v72 = vsub.s32 0, %v71
    %v73 = vrot.slane %v69, %v72
    %v90 = vunpack.c.l.b16 %v53
    %v91 = vunpack.c.l.b16 %v54
    %v92 = vunpack.c.l.b16 %v55
    %v93 = vunpack.c.l.b16 %v56
    %v94 = vunpack.c.l.b16 %v57
    %v95 = vunpack.c.l.b16 %v58
    %v96 = vunpack.c.l.b16 %v59
    %v97 = vunpack.c.l.b16 %v60
    %v98 = vunpack.c.l.b16 %v61
    %v99 = vunpack.c.l.b16 %v62
    %v100 = vunpack.c.l.b16 %v63
    %v101 = vunpack.c.l.b16 %v64
    %v102 = vunpack.c.l.b16 %v65
    %v103 = vunpack.c.l.b16 %v66
    %v104 = vunpack.c.l.b16 %v67
    %v105 = vunpack.c.l.b16 %v68
    %v106 = vpack.c.b16 %v91, %v90
    %v107 = vpack.c.b16 %v93, %v92
    %v108 = vpack.c.b16 %v95, %v94
    %v109 = vpack.c.b16 %v97, %v96
    %v110 = vpack.c.b16 %v99, %v98
    %v111 = vpack.c.b16 %v101, %v100
    %v112 = vpack.c.b16 %v103, %v102
    %v113 = vpack.c.b16 %v105, %v104
    %122 = vmatprep.subr.bf16.mxu0 0
    %123 = vmatpush1.bf16.msra.mxu0 %v106
    %124 = vmatprep.subr.bf16.mxu0 0
    %125 = vmatpush1.bf16.msra.mxu0 %v107
    %126 = vmatprep.subr.bf16.mxu0 0
    %127 = vmatpush1.bf16.msra.mxu0 %v108
    %128 = vmatprep.subr.bf16.mxu0 0
    %129 = vmatpush1.bf16.msra.mxu0 %v109
    %130 = vmatprep.subr.bf16.mxu0 0
    %131 = vmatpush1.bf16.msra.mxu0 %v110
    %132 = vmatprep.subr.bf16.mxu0 0
    %133 = vmatpush1.bf16.msra.mxu0 %v111
    %134 = vmatprep.subr.bf16.mxu0 0
    %135 = vmatpush1.bf16.msra.mxu0 %v112
    %136 = vmatprep.subr.bf16.mxu0 0
    %137 = vmatpush1.bf16.msra.mxu0 %v113
    %138 = vmatprep.subr.bf16.mxu0 0
    %139 = vmatpush1.bf16.msra.mxu0 0
    %140 = vmatprep.subr.bf16.mxu0 0
    %141 = vmatpush1.bf16.msra.mxu0 0
    %142 = vmatprep.subr.bf16.mxu0 0
    %143 = vmatpush1.bf16.msra.mxu0 0
    %144 = vmatprep.subr.bf16.mxu0 0
    %145 = vmatpush1.bf16.msra.mxu0 0
    %146 = vmatprep.subr.bf16.mxu0 0
    %147 = vmatpush1.bf16.msra.mxu0 0
    %148 = vmatprep.subr.bf16.mxu0 0
    %149 = vmatpush1.bf16.msra.mxu0 0
    %150 = vmatprep.subr.bf16.mxu0 0
    %151 = vmatpush1.bf16.msra.mxu0 0
    %152 = vmatprep.subr.bf16.mxu0 0
    %153 = vmatpush1.bf16.msra.mxu0 0
    %154 = vmatprep.mubr.bf16.mxu0 0
    %155 = vmatmul.mubr.bf16.gmra.mrb[0].mxu0 %v52
    %v156 = vpop.f32.mrb[0].mxu0
    %v157 = vadd.f32 %v73, %v156
    %v158 = vpop.f32.mrb[0].mxu0
    %v159 = vpop.f32.mrb[0].mxu0
    %v160 = vpop.f32.mrb[0].mxu0
    %161 = vdwg.mxu0
    %v162 = vmax.f32 %v157, 0.0
    %v163 = vpack.c.bf16 %v162, %v162
    %s164 = scalar_lea.vmem [#allocation4], 64
    %v165 = vld [vmem:[%s164] sm:$0xf]
    %v166 = vld [vmem:[%s164 + $0x4] sm:$0xf]
    %v167 = vld [vmem:[%s164 + $0x8] sm:$0xf]
    %v168 = vld [vmem:[%s164 + $0xc] sm:$0xf]
    %v169 = vld [vmem:[%s164 + $0x10] sm:$0xf]
    %v170 = vld [vmem:[%s164 + $0x14] sm:$0xf]
    %v171 = vld [vmem:[%s164 + $0x18] sm:$0xf]
    %v172 = vld [vmem:[%s164 + $0x1c] sm:$0xf]
    %v173 = vld [vmem:[%s164 + $0x20] sm:$0xf]
    %v174 = vld [vmem:[%s164 + $0x24] sm:$0xf]
    %v175 = vld [vmem:[%s164 + $0x28] sm:$0xf]
    %v176 = vld [vmem:[%s164 + $0x2c] sm:$0xf]
    %v177 = vld [vmem:[%s164 + $0x30] sm:$0xf]
    %v178 = vld [vmem:[%s164 + $0x34] sm:$0xf]
    %v179 = vld [vmem:[%s164 + $0x38] sm:$0xf]
    %v180 = vld [vmem:[%s164 + $0x3c] sm:$0xf]
    %v181 = vld [vmem:[#allocation6 + $0x1] sm:$0x1]
    %v182 = vlaneseq
    %v183 = vshrl.u32 %v182, 7
    %v184 = vsub.s32 0, %v183
    %v185 = vrot.slane %v181, %v184
    %v202 = vunpack.c.l.b16 %v165
    %v203 = vunpack.c.l.b16 %v166
    %v204 = vunpack.c.l.b16 %v167
    %v205 = vunpack.c.l.b16 %v168
    %v206 = vunpack.c.l.b16 %v169
    %v207 = vunpack.c.l.b16 %v170
    %v208 = vunpack.c.l.b16 %v171
    %v209 = vunpack.c.l.b16 %v172
    %v210 = vunpack.c.l.b16 %v173
    %v211 = vunpack.c.l.b16 %v174
    %v212 = vunpack.c.l.b16 %v175
    %v213 = vunpack.c.l.b16 %v176
    %v214 = vunpack.c.l.b16 %v177
    %v215 = vunpack.c.l.b16 %v178
    %v216 = vunpack.c.l.b16 %v179
    %v217 = vunpack.c.l.b16 %v180
    %v218 = vpack.c.b16 %v203, %v202
    %v219 = vpack.c.b16 %v205, %v204
    %v220 = vpack.c.b16 %v207, %v206
    %v221 = vpack.c.b16 %v209, %v208
    %v222 = vpack.c.b16 %v211, %v210
    %v223 = vpack.c.b16 %v213, %v212
    %v224 = vpack.c.b16 %v215, %v214
    %v225 = vpack.c.b16 %v217, %v216
    %234 = vmatprep.subr.bf16.mxu0 0
    %235 = vmatpush1.bf16.msra.mxu0 %v218
    %236 = vmatprep.subr.bf16.mxu0 0
    %237 = vmatpush1.bf16.msra.mxu0 %v219
    %238 = vmatprep.subr.bf16.mxu0 0
    %239 = vmatpush1.bf16.msra.mxu0 %v220
    %240 = vmatprep.subr.bf16.mxu0 0
    %241 = vmatpush1.bf16.msra.mxu0 %v221
    %242 = vmatprep.subr.bf16.mxu0 0
    %243 = vmatpush1.bf16.msra.mxu0 %v222
    %244 = vmatprep.subr.bf16.mxu0 0
    %245 = vmatpush1.bf16.msra.mxu0 %v223
    %246 = vmatprep.subr.bf16.mxu0 0
    %247 = vmatpush1.bf16.msra.mxu0 %v224
    %248 = vmatprep.subr.bf16.mxu0 0
    %249 = vmatpush1.bf16.msra.mxu0 %v225
    %250 = vmatprep.subr.bf16.mxu0 0
    %251 = vmatpush1.bf16.msra.mxu0 0
    %252 = vmatprep.subr.bf16.mxu0 0
    %253 = vmatpush1.bf16.msra.mxu0 0
    %254 = vmatprep.subr.bf16.mxu0 0
    %255 = vmatpush1.bf16.msra.mxu0 0
    %256 = vmatprep.subr.bf16.mxu0 0
    %257 = vmatpush1.bf16.msra.mxu0 0
    %258 = vmatprep.subr.bf16.mxu0 0
    %259 = vmatpush1.bf16.msra.mxu0 0
    %260 = vmatprep.subr.bf16.mxu0 0
    %261 = vmatpush1.bf16.msra.mxu0 0
    %262 = vmatprep.subr.bf16.mxu0 0
    %263 = vmatpush1.bf16.msra.mxu0 0
    %264 = vmatprep.subr.bf16.mxu0 0
    %265 = vmatpush1.bf16.msra.mxu0 0
    %266 = vmatprep.mubr.bf16.mxu0 0
    %267 = vmatmul.mubr.bf16.gmra.mrb[0].mxu0 %v163
    %v268 = vpop.f32.mrb[0].mxu0
    %v269 = vadd.f32 %v185, %v268
    %v270 = vpop.f32.mrb[0].mxu0
    %v271 = vpop.f32.mrb[0].mxu0
    %v272 = vpop.f32.mrb[0].mxu0
    %273 = vdwg.mxu0
    %v274 = vmax.f32 %v269, 0.0
    %v275 = vpack.c.bf16 %v274, %v274
    %s276 = scalar_lea.vmem [#allocation4], 128
    %v277 = vld [vmem:[%s276] sm:$0xf]
    %v278 = vld [vmem:[%s276 + $0x4] sm:$0xf]
    %v279 = vld [vmem:[%s276 + $0x8] sm:$0xf]
    %v280 = vld [vmem:[%s276 + $0xc] sm:$0xf]
    %v281 = vld [vmem:[%s276 + $0x10] sm:$0xf]
    %v282 = vld [vmem:[%s276 + $0x14] sm:$0xf]
    %v283 = vld [vmem:[%s276 + $0x18] sm:$0xf]
    %v284 = vld [vmem:[%s276 + $0x1c] sm:$0xf]
    %v285 = vld [vmem:[%s276 + $0x20] sm:$0xf]
    %v286 = vld [vmem:[%s276 + $0x24] sm:$0xf]
    %v287 = vld [vmem:[%s276 + $0x28] sm:$0xf]
    %v288 = vld [vmem:[%s276 + $0x2c] sm:$0xf]
    %v289 = vld [vmem:[%s276 + $0x30] sm:$0xf]
    %v290 = vld [vmem:[%s276 + $0x34] sm:$0xf]
    %v291 = vld [vmem:[%s276 + $0x38] sm:$0xf]
    %v292 = vld [vmem:[%s276 + $0x3c] sm:$0xf]
    %v293 = vld [vmem:[#allocation6 + $0x2] sm:$0x1]
    %v294 = vlaneseq
    %v295 = vshrl.u32 %v294, 7
    %v296 = vsub.s32 0, %v295
    %v297 = vrot.slane %v293, %v296
    %v314 = vunpack.c.l.b16 %v277
    %v315 = vunpack.c.l.b16 %v278
    %v316 = vunpack.c.l.b16 %v279
    %v317 = vunpack.c.l.b16 %v280
    %v318 = vunpack.c.l.b16 %v281
    %v319 = vunpack.c.l.b16 %v282
    %v320 = vunpack.c.l.b16 %v283
    %v321 = vunpack.c.l.b16 %v284
    %v322 = vunpack.c.l.b16 %v285
    %v323 = vunpack.c.l.b16 %v286
    %v324 = vunpack.c.l.b16 %v287
    %v325 = vunpack.c.l.b16 %v288
    %v326 = vunpack.c.l.b16 %v289
    %v327 = vunpack.c.l.b16 %v290
    %v328 = vunpack.c.l.b16 %v291
    %v329 = vunpack.c.l.b16 %v292
    %v330 = vpack.c.b16 %v315, %v314
    %v331 = vpack.c.b16 %v317, %v316
    %v332 = vpack.c.b16 %v319, %v318
    %v333 = vpack.c.b16 %v321, %v320
    %v334 = vpack.c.b16 %v323, %v322
    %v335 = vpack.c.b16 %v325, %v324
    %v336 = vpack.c.b16 %v327, %v326
    %v337 = vpack.c.b16 %v329, %v328
    %346 = vmatprep.subr.bf16.mxu0 0
    %347 = vmatpush1.bf16.msra.mxu0 %v330
    %348 = vmatprep.subr.bf16.mxu0 0
    %349 = vmatpush1.bf16.msra.mxu0 %v331
    %350 = vmatprep.subr.bf16.mxu0 0
    %351 = vmatpush1.bf16.msra.mxu0 %v332
    %352 = vmatprep.subr.bf16.mxu0 0
    %353 = vmatpush1.bf16.msra.mxu0 %v333
    %354 = vmatprep.subr.bf16.mxu0 0
    %355 = vmatpush1.bf16.msra.mxu0 %v334
    %356 = vmatprep.subr.bf16.mxu0 0
    %357 = vmatpush1.bf16.msra.mxu0 %v335
    %358 = vmatprep.subr.bf16.mxu0 0
    %359 = vmatpush1.bf16.msra.mxu0 %v336
    %360 = vmatprep.subr.bf16.mxu0 0
    %361 = vmatpush1.bf16.msra.mxu0 %v337
    %362 = vmatprep.subr.bf16.mxu0 0
    %363 = vmatpush1.bf16.msra.mxu0 0
    %364 = vmatprep.subr.bf16.mxu0 0
    %365 = vmatpush1.bf16.msra.mxu0 0
    %366 = vmatprep.subr.bf16.mxu0 0
    %367 = vmatpush1.bf16.msra.mxu0 0
    %368 = vmatprep.subr.bf16.mxu0 0
    %369 = vmatpush1.bf16.msra.mxu0 0
    %370 = vmatprep.subr.bf16.mxu0 0
    %371 = vmatpush1.bf16.msra.mxu0 0
    %372 = vmatprep.subr.bf16.mxu0 0
    %373 = vmatpush1.bf16.msra.mxu0 0
    %374 = vmatprep.subr.bf16.mxu0 0
    %375 = vmatpush1.bf16.msra.mxu0 0
    %376 = vmatprep.subr.bf16.mxu0 0
    %377 = vmatpush1.bf16.msra.mxu0 0
    %378 = vmatprep.mubr.bf16.mxu0 0
    %379 = vmatmul.mubr.bf16.gmra.mrb[0].mxu0 %v275
    %v380 = vpop.f32.mrb[0].mxu0
    %v381 = vadd.f32 %v297, %v380
    %v382 = vpop.f32.mrb[0].mxu0
    %v383 = vpop.f32.mrb[0].mxu0
    %v384 = vpop.f32.mrb[0].mxu0
    %385 = vdwg.mxu0
    %vm386 = vcmp.ge.f32.partialorder %v381, 0.0
    %v387 = vmul.f32 %v381, 0.01
    %v388 = vsel %vm386, %v381, %v387
    %v389 = vpack.c.bf16 %v388, %v388
    %s390 = scalar_lea.vmem [#allocation4], 192
    %v391 = vld [vmem:[%s390] sm:$0xf]
    %v392 = vld [vmem:[%s390 + $0x4] sm:$0xf]
    %v393 = vld [vmem:[%s390 + $0x8] sm:$0xf]
    %v394 = vld [vmem:[%s390 + $0xc] sm:$0xf]
    %v395 = vld [vmem:[%s390 + $0x10] sm:$0xf]
    %v396 = vld [vmem:[%s390 + $0x14] sm:$0xf]
    %v397 = vld [vmem:[%s390 + $0x18] sm:$0xf]
    %v398 = vld [vmem:[%s390 + $0x1c] sm:$0xf]
    %v399 = vld [vmem:[%s390 + $0x20] sm:$0xf]
    %v400 = vld [vmem:[%s390 + $0x24] sm:$0xf]
    %v401 = vld [vmem:[%s390 + $0x28] sm:$0xf]
    %v402 = vld [vmem:[%s390 + $0x2c] sm:$0xf]
    %v403 = vld [vmem:[%s390 + $0x30] sm:$0xf]
    %v404 = vld [vmem:[%s390 + $0x34] sm:$0xf]
    %v405 = vld [vmem:[%s390 + $0x38] sm:$0xf]
    %v406 = vld [vmem:[%s390 + $0x3c] sm:$0xf]
    %v407 = vld [vmem:[#allocation6 + $0x3] sm:$0x1]
    %v408 = vlaneseq
    %v409 = vshrl.u32 %v408, 7
    %v410 = vsub.s32 0, %v409
    %v411 = vrot.slane %v407, %v410
    %v428 = vunpack.c.l.b16 %v391
    %v429 = vunpack.c.l.b16 %v392
    %v430 = vunpack.c.l.b16 %v393
    %v431 = vunpack.c.l.b16 %v394
    %v432 = vunpack.c.l.b16 %v395
    %v433 = vunpack.c.l.b16 %v396
    %v434 = vunpack.c.l.b16 %v397
    %v435 = vunpack.c.l.b16 %v398
    %v436 = vunpack.c.l.b16 %v399
    %v437 = vunpack.c.l.b16 %v400
    %v438 = vunpack.c.l.b16 %v401
    %v439 = vunpack.c.l.b16 %v402
    %v440 = vunpack.c.l.b16 %v403
    %v441 = vunpack.c.l.b16 %v404
    %v442 = vunpack.c.l.b16 %v405
    %v443 = vunpack.c.l.b16 %v406
    %v444 = vpack.c.b16 %v429, %v428
    %v445 = vpack.c.b16 %v431, %v430
    %v446 = vpack.c.b16 %v433, %v432
    %v447 = vpack.c.b16 %v435, %v434
    %v448 = vpack.c.b16 %v437, %v436
    %v449 = vpack.c.b16 %v439, %v438
    %v450 = vpack.c.b16 %v441, %v440
    %v451 = vpack.c.b16 %v443, %v442
    %460 = vmatprep.subr.bf16.mxu0 0
    %461 = vmatpush1.bf16.msra.mxu0 %v444
    %462 = vmatprep.subr.bf16.mxu0 0
    %463 = vmatpush1.bf16.msra.mxu0 %v445
    %464 = vmatprep.subr.bf16.mxu0 0
    %465 = vmatpush1.bf16.msra.mxu0 %v446
    %466 = vmatprep.subr.bf16.mxu0 0
    %467 = vmatpush1.bf16.msra.mxu0 %v447
    %468 = vmatprep.subr.bf16.mxu0 0
    %469 = vmatpush1.bf16.msra.mxu0 %v448
    %470 = vmatprep.subr.bf16.mxu0 0
    %471 = vmatpush1.bf16.msra.mxu0 %v449
    %472 = vmatprep.subr.bf16.mxu0 0
    %473 = vmatpush1.bf16.msra.mxu0 %v450
    %474 = vmatprep.subr.bf16.mxu0 0
    %475 = vmatpush1.bf16.msra.mxu0 %v451
    %476 = vmatprep.subr.bf16.mxu0 0
    %477 = vmatpush1.bf16.msra.mxu0 0
    %478 = vmatprep.subr.bf16.mxu0 0
    %479 = vmatpush1.bf16.msra.mxu0 0
    %480 = vmatprep.subr.bf16.mxu0 0
    %481 = vmatpush1.bf16.msra.mxu0 0
    %482 = vmatprep.subr.bf16.mxu0 0
    %483 = vmatpush1.bf16.msra.mxu0 0
    %484 = vmatprep.subr.bf16.mxu0 0
    %485 = vmatpush1.bf16.msra.mxu0 0
    %486 = vmatprep.subr.bf16.mxu0 0
    %487 = vmatpush1.bf16.msra.mxu0 0
    %488 = vmatprep.subr.bf16.mxu0 0
    %489 = vmatpush1.bf16.msra.mxu0 0
    %490 = vmatprep.subr.bf16.mxu0 0
    %491 = vmatpush1.bf16.msra.mxu0 0
    %492 = vmatprep.mubr.bf16.mxu0 0
    %493 = vmatmul.mubr.bf16.gmra.mrb[0].mxu0 %v389
    %v494 = vpop.f32.mrb[0].mxu0
    %v495 = vadd.f32 %v411, %v494
    %v496 = vpop.f32.mrb[0].mxu0
    %v497 = vpop.f32.mrb[0].mxu0
    %v498 = vpop.f32.mrb[0].mxu0
    %499 = vdwg.mxu0
    %vm500 = vcmp.ge.f32.partialorder %v495, 0.0
    %v501 = vmul.f32 %v495, 0.01
    %v502 = vsel %vm500, %v495, %v501
    %v503 = vpack.c.bf16 %v502, %v502
    %s504 = scalar_lea.vmem [#allocation4], 256
    %v505 = vld [vmem:[%s504] sm:$0xf]
    %v506 = vld [vmem:[%s504 + $0x4] sm:$0xf]
    %v507 = vld [vmem:[%s504 + $0x8] sm:$0xf]
    %v508 = vld [vmem:[%s504 + $0xc] sm:$0xf]
    %v509 = vld [vmem:[%s504 + $0x10] sm:$0xf]
    %v510 = vld [vmem:[%s504 + $0x14] sm:$0xf]
    %v511 = vld [vmem:[%s504 + $0x18] sm:$0xf]
    %v512 = vld [vmem:[%s504 + $0x1c] sm:$0xf]
    %v513 = vld [vmem:[%s504 + $0x20] sm:$0xf]
    %v514 = vld [vmem:[%s504 + $0x24] sm:$0xf]
    %v515 = vld [vmem:[%s504 + $0x28] sm:$0xf]
    %v516 = vld [vmem:[%s504 + $0x2c] sm:$0xf]
    %v517 = vld [vmem:[%s504 + $0x30] sm:$0xf]
    %v518 = vld [vmem:[%s504 + $0x34] sm:$0xf]
    %v519 = vld [vmem:[%s504 + $0x38] sm:$0xf]
    %v520 = vld [vmem:[%s504 + $0x3c] sm:$0xf]
    %v521 = vld [vmem:[#allocation6 + $0x4] sm:$0x1]
    %v522 = vlaneseq
    %v523 = vshrl.u32 %v522, 7
    %v524 = vsub.s32 0, %v523
    %v525 = vrot.slane %v521, %v524
    %v542 = vunpack.c.l.b16 %v505
    %v543 = vunpack.c.l.b16 %v506
    %v544 = vunpack.c.l.b16 %v507
    %v545 = vunpack.c.l.b16 %v508
    %v546 = vunpack.c.l.b16 %v509
    %v547 = vunpack.c.l.b16 %v510
    %v548 = vunpack.c.l.b16 %v511
    %v549 = vunpack.c.l.b16 %v512
    %v550 = vunpack.c.l.b16 %v513
    %v551 = vunpack.c.l.b16 %v514
    %v552 = vunpack.c.l.b16 %v515
    %v553 = vunpack.c.l.b16 %v516
    %v554 = vunpack.c.l.b16 %v517
    %v555 = vunpack.c.l.b16 %v518
    %v556 = vunpack.c.l.b16 %v519
    %v557 = vunpack.c.l.b16 %v520
    %v558 = vpack.c.b16 %v543, %v542
    %v559 = vpack.c.b16 %v545, %v544
    %v560 = vpack.c.b16 %v547, %v546
    %v561 = vpack.c.b16 %v549, %v548
    %v562 = vpack.c.b16 %v551, %v550
    %v563 = vpack.c.b16 %v553, %v552
    %v564 = vpack.c.b16 %v555, %v554
    %v565 = vpack.c.b16 %v557, %v556
    %574 = vmatprep.subr.bf16.mxu0 0
    %575 = vmatpush1.bf16.msra.mxu0 %v558
    %576 = vmatprep.subr.bf16.mxu0 0
    %577 = vmatpush1.bf16.msra.mxu0 %v559
    %578 = vmatprep.subr.bf16.mxu0 0
    %579 = vmatpush1.bf16.msra.mxu0 %v560
    %580 = vmatprep.subr.bf16.mxu0 0
    %581 = vmatpush1.bf16.msra.mxu0 %v561
    %582 = vmatprep.subr.bf16.mxu0 0
    %583 = vmatpush1.bf16.msra.mxu0 %v562
    %584 = vmatprep.subr.bf16.mxu0 0
    %585 = vmatpush1.bf16.msra.mxu0 %v563
    %586 = vmatprep.subr.bf16.mxu0 0
    %587 = vmatpush1.bf16.msra.mxu0 %v564
    %588 = vmatprep.subr.bf16.mxu0 0
    %589 = vmatpush1.bf16.msra.mxu0 %v565
    %590 = vmatprep.subr.bf16.mxu0 0
    %591 = vmatpush1.bf16.msra.mxu0 0
    %592 = vmatprep.subr.bf16.mxu0 0
    %593 = vmatpush1.bf16.msra.mxu0 0
    %594 = vmatprep.subr.bf16.mxu0 0
    %595 = vmatpush1.bf16.msra.mxu0 0
    %596 = vmatprep.subr.bf16.mxu0 0
    %597 = vmatpush1.bf16.msra.mxu0 0
    %598 = vmatprep.subr.bf16.mxu0 0
    %599 = vmatpush1.bf16.msra.mxu0 0
    %600 = vmatprep.subr.bf16.mxu0 0
    %601 = vmatpush1.bf16.msra.mxu0 0
    %602 = vmatprep.subr.bf16.mxu0 0
    %603 = vmatpush1.bf16.msra.mxu0 0
    %604 = vmatprep.subr.bf16.mxu0 0
    %605 = vmatpush1.bf16.msra.mxu0 0
    %606 = vmatprep.mubr.bf16.mxu0 0
    %607 = vmatmul.mubr.bf16.gmra.mrb[0].mxu0 %v503
    %v608 = vpop.f32.mrb[0].mxu0
    %v609 = vadd.f32 %v525, %v608
    %v610 = vpop.f32.mrb[0].mxu0
    %v611 = vpop.f32.mrb[0].mxu0
    %v612 = vpop.f32.mrb[0].mxu0
    %613 = vdwg.mxu0
    %vm614 = vcmp.ge.f32.partialorder %v609, 0.0
    %v615 = vmul.f32 %v609, 0.01
    %v616 = vsel %vm614, %v609, %v615
    %v617 = vpack.c.bf16 %v616, %v616
    %s618 = scalar_lea.vmem [#allocation4], 320
    %v619 = vld [vmem:[%s618] sm:$0xf]
    %v620 = vld [vmem:[%s618 + $0x4] sm:$0xf]
    %v621 = vld [vmem:[%s618 + $0x8] sm:$0xf]
    %v622 = vld [vmem:[%s618 + $0xc] sm:$0xf]
    %v623 = vld [vmem:[%s618 + $0x10] sm:$0xf]
    %v624 = vld [vmem:[%s618 + $0x14] sm:$0xf]
    %v625 = vld [vmem:[%s618 + $0x18] sm:$0xf]
    %v626 = vld [vmem:[%s618 + $0x1c] sm:$0xf]
    %v627 = vld [vmem:[%s618 + $0x20] sm:$0xf]
    %v628 = vld [vmem:[%s618 + $0x24] sm:$0xf]
    %v629 = vld [vmem:[%s618 + $0x28] sm:$0xf]
    %v630 = vld [vmem:[%s618 + $0x2c] sm:$0xf]
    %v631 = vld [vmem:[%s618 + $0x30] sm:$0xf]
    %v632 = vld [vmem:[%s618 + $0x34] sm:$0xf]
    %v633 = vld [vmem:[%s618 + $0x38] sm:$0xf]
    %v634 = vld [vmem:[%s618 + $0x3c] sm:$0xf]
    %v635 = vld [vmem:[#allocation6 + $0x5] sm:$0x1]
    %v636 = vlaneseq
    %v637 = vshrl.u32 %v636, 7
    %v638 = vsub.s32 0, %v637
    %v639 = vrot.slane %v635, %v638
    %v656 = vunpack.c.l.b16 %v619
    %v657 = vunpack.c.l.b16 %v620
    %v658 = vunpack.c.l.b16 %v621
    %v659 = vunpack.c.l.b16 %v622
    %v660 = vunpack.c.l.b16 %v623
    %v661 = vunpack.c.l.b16 %v624
    %v662 = vunpack.c.l.b16 %v625
    %v663 = vunpack.c.l.b16 %v626
    %v664 = vunpack.c.l.b16 %v627
    %v665 = vunpack.c.l.b16 %v628
    %v666 = vunpack.c.l.b16 %v629
    %v667 = vunpack.c.l.b16 %v630
    %v668 = vunpack.c.l.b16 %v631
    %v669 = vunpack.c.l.b16 %v632
    %v670 = vunpack.c.l.b16 %v633
    %v671 = vunpack.c.l.b16 %v634
    %v672 = vpack.c.b16 %v657, %v656
    %v673 = vpack.c.b16 %v659, %v658
    %v674 = vpack.c.b16 %v661, %v660
    %v675 = vpack.c.b16 %v663, %v662
    %v676 = vpack.c.b16 %v665, %v664
    %v677 = vpack.c.b16 %v667, %v666
    %v678 = vpack.c.b16 %v669, %v668
    %v679 = vpack.c.b16 %v671, %v670
    %688 = vmatprep.subr.bf16.mxu0 0
    %689 = vmatpush1.bf16.msra.mxu0 %v672
    %690 = vmatprep.subr.bf16.mxu0 0
    %691 = vmatpush1.bf16.msra.mxu0 %v673
    %692 = vmatprep.subr.bf16.mxu0 0
    %693 = vmatpush1.bf16.msra.mxu0 %v674
    %694 = vmatprep.subr.bf16.mxu0 0
    %695 = vmatpush1.bf16.msra.mxu0 %v675
    %696 = vmatprep.subr.bf16.mxu0 0
    %697 = vmatpush1.bf16.msra.mxu0 %v676
    %698 = vmatprep.subr.bf16.mxu0 0
    %699 = vmatpush1.bf16.msra.mxu0 %v677
    %700 = vmatprep.subr.bf16.mxu0 0
    %701 = vmatpush1.bf16.msra.mxu0 %v678
    %702 = vmatprep.subr.bf16.mxu0 0
    %703 = vmatpush1.bf16.msra.mxu0 %v679
    %704 = vmatprep.subr.bf16.mxu0 0
    %705 = vmatpush1.bf16.msra.mxu0 0
    %706 = vmatprep.subr.bf16.mxu0 0
    %707 = vmatpush1.bf16.msra.mxu0 0
    %708 = vmatprep.subr.bf16.mxu0 0
    %709 = vmatpush1.bf16.msra.mxu0 0
    %710 = vmatprep.subr.bf16.mxu0 0
    %711 = vmatpush1.bf16.msra.mxu0 0
    %712 = vmatprep.subr.bf16.mxu0 0
    %713 = vmatpush1.bf16.msra.mxu0 0
    %714 = vmatprep.subr.bf16.mxu0 0
    %715 = vmatpush1.bf16.msra.mxu0 0
    %716 = vmatprep.subr.bf16.mxu0 0
    %717 = vmatpush1.bf16.msra.mxu0 0
    %718 = vmatprep.subr.bf16.mxu0 0
    %719 = vmatpush1.bf16.msra.mxu0 0
    %720 = vmatprep.mubr.bf16.mxu0 0
    %721 = vmatmul.mubr.bf16.gmra.mrb[0].mxu0 %v617
    %v722 = vpop.f32.mrb[0].mxu0
    %v723 = vadd.f32 %v639, %v722
    %v724 = vpop.f32.mrb[0].mxu0
    %v725 = vpop.f32.mrb[0].mxu0
    %v726 = vpop.f32.mrb[0].mxu0
    %727 = vdwg.mxu0
    %vm728 = vcmask 7168
    %729 = vst.msk [vmem:[%s3] sm:$0xff] %vm728, %v723
    // Predicated region
    $region26: #{tpu_custom_call.1} parent=1 // pred_check
      _
    $region27: #{tpu_custom_call.1} parent=1 // pred_check_branch
      %731 = sbr.rel (0) target = $region29
    $region28: #{tpu_custom_call.1} parent=1 // pred_region
      _
    $region29: #{tpu_custom_call.1} parent=1 // pred_fallthru
      _
    // Predicated region
    $region30: #{tpu_custom_call.1} parent=1 // pred_check
      _
    $region31: #{tpu_custom_call.1} parent=1 // pred_check_branch
      %733 = sbr.rel (0) target = $region33
    $region32: #{tpu_custom_call.1} parent=1 // pred_region
      _
    $region33: #{tpu_custom_call.1} parent=1 // pred_fallthru
      _
    %734 = vsyncpa [#allocation3], 1
    %735 = vsyncpa [#allocation5], 1

</llo_original>
